<compile_context>
chip_gen: v7x
topology: tpu7x:2x2x1
jax: 0.10.0
libtpu: 0.0.40
codegen_flags: <defaults>
</compile_context>

<pallas_src>
import jax
import jax.numpy as jnp
from jax.experimental import pallas as pl
from jax.experimental.pallas import tpu as pltpu


def _fused_identity_kernel(*refs):
    """Identity copy of N inputs to N outputs in a single kernel body."""
    n = len(refs) // 2
    in_refs, out_refs = refs[:n], refs[n:]
    for x_ref, o_ref in zip(in_refs, out_refs):
        o_ref[...] = x_ref[...]


def _fused_pallas_materialize(arrays):
    """One grid-less pallas_call that copies every array through VMEM in its native shape."""
    n = len(arrays)
    vmem_spec = pl.BlockSpec(memory_space=pltpu.MemorySpace.VMEM)  # full-array block, no tiling
    outs = pl.pallas_call(
        _fused_identity_kernel,
        out_shape=tuple(jax.ShapeDtypeStruct(x.shape, x.dtype) for x in arrays),
        in_specs=[vmem_spec] * n,
        out_specs=tuple([vmem_spec] * n),
        input_output_aliases={i: i for i in range(n)},
        compiler_params=pltpu.CompilerParams(has_side_effects=True),
    )(*arrays)
    return list(outs)


def attention_visualization_forward(
    spatial_maps, hier_maps, cross_maps, mag_importance, *, materialize=False
):
    """JAX equivalent of AttentionVisualization.forward.

    materialize=False (default): pure pass-through, zero kernel cost — exactly matches the
    PyTorch semantics and is the recommended production path.
    materialize=True: route all four tensors through a single fused Pallas identity kernel
    (native shapes, full-array VMEM blocks, aliased outputs, side-effecting so it survives DCE).
    """
    if not materialize:
        return {
            "spatial": spatial_maps,
            "hierarchical": hier_maps,
            "cross": cross_maps,
            "importance": mag_importance,
        }

    sp, hi, cr, im = _fused_pallas_materialize(
        [spatial_maps, hier_maps, cross_maps, mag_importance]
    )
    return {"spatial": sp, "hierarchical": hi, "cross": cr, "importance": im}


if __name__ == "__main__":
    key = jax.random.PRNGKey(0)
    k1, k2, k3, k4 = jax.random.split(key, 4)

    B, C, H, W = 2, 4, 16, 16   # spatial / hierarchical attention maps (NCHW)
    S = 8                       # sequence length for cross-attention maps

    spatial_maps = jax.random.normal(k1, (B, C, H, W), dtype=jnp.float32)
    hier_maps = jax.random.normal(k2, (B, C, H, W), dtype=jnp.float32)
    cross_maps = jax.random.normal(k3, (B, S, S), dtype=jnp.float32)
    mag_importance = jax.random.normal(k4, (B, S), dtype=jnp.float32)

    # Default (recommended) path: pure pass-through, no kernel launch.
    out_fast = attention_visualization_forward(
        spatial_maps, hier_maps, cross_maps, mag_importance
    )
    assert out_fast["spatial"] is spatial_maps
    assert out_fast["hierarchical"] is hier_maps
    assert out_fast["cross"] is cross_maps
    assert out_fast["importance"] is mag_importance

    # Fused Pallas materialization path (single launch, native shapes, aliased outputs).
    fwd = jax.jit(attention_visualization_forward, static_argnames=("materialize",))
    out = fwd(spatial_maps, hier_maps, cross_maps, mag_importance, materialize=True)
    jax.block_until_ready(out)

    # Semantics check: forward is an exact pass-through of each input.
    assert out["spatial"].shape == (B, C, H, W) and out["spatial"].dtype == jnp.float32
    assert out["hierarchical"].shape == (B, C, H, W)
    assert out["cross"].shape == (B, S, S)
    assert out["importance"].shape == (B, S)
    assert bool(jnp.array_equal(out["spatial"], spatial_maps))
    assert bool(jnp.array_equal(out["hierarchical"], hier_maps))
    assert bool(jnp.array_equal(out["cross"], cross_maps))
    assert bool(jnp.array_equal(out["importance"], mag_importance))

    print("KERNEL_OK")
</pallas_src>

<mosaic_0001>
module attributes {stable_mosaic.version = 11 : i64} {
  func.func @_fused_identity_kernel(%arg0: memref<2x4x16x16xf32, #tpu.memory_space<vmem>>, %arg1: memref<2x4x16x16xf32, #tpu.memory_space<vmem>>, %arg2: memref<2x8x8xf32, #tpu.memory_space<vmem>>, %arg3: memref<2x8xf32, #tpu.memory_space<vmem>>, %arg4: memref<2x4x16x16xf32, #tpu.memory_space<vmem>>, %arg5: memref<2x4x16x16xf32, #tpu.memory_space<vmem>>, %arg6: memref<2x8x8xf32, #tpu.memory_space<vmem>>, %arg7: memref<2x8xf32, #tpu.memory_space<vmem>>) attributes {dimension_semantics = [], scalar_prefetch = 0 : i64, scratch_operands = 0 : i64, tpu.core_type = #tpu.core_type<tc>} {
    %c0 = arith.constant 0 : index
    %c0_0 = arith.constant 0 : index
    %c0_1 = arith.constant 0 : index
    %c0_2 = arith.constant 0 : index
    %0 = vector.load %arg0[%c0, %c0_0, %c0_1, %c0_2] : memref<2x4x16x16xf32, #tpu.memory_space<vmem>>, vector<2x4x16x16xf32>
    %c0_3 = arith.constant 0 : index
    %c0_4 = arith.constant 0 : index
    %c0_5 = arith.constant 0 : index
    %c0_6 = arith.constant 0 : index
    %1 = vector.load %arg4[%c0_3, %c0_4, %c0_5, %c0_6] : memref<2x4x16x16xf32, #tpu.memory_space<vmem>>, vector<2x4x16x16xf32>
    tpu.vector_store %arg4[%c0_3, %c0_4, %c0_5, %c0_6], %0 {strides = array<i32>} : memref<2x4x16x16xf32, #tpu.memory_space<vmem>>, vector<2x4x16x16xf32>,
    %c0_7 = arith.constant 0 : index
    %c0_8 = arith.constant 0 : index
    %c0_9 = arith.constant 0 : index
    %c0_10 = arith.constant 0 : index
    %2 = vector.load %arg1[%c0_7, %c0_8, %c0_9, %c0_10] : memref<2x4x16x16xf32, #tpu.memory_space<vmem>>, vector<2x4x16x16xf32>
    %c0_11 = arith.constant 0 : index
    %c0_12 = arith.constant 0 : index
    %c0_13 = arith.constant 0 : index
    %c0_14 = arith.constant 0 : index
    %3 = vector.load %arg5[%c0_11, %c0_12, %c0_13, %c0_14] : memref<2x4x16x16xf32, #tpu.memory_space<vmem>>, vector<2x4x16x16xf32>
    tpu.vector_store %arg5[%c0_11, %c0_12, %c0_13, %c0_14], %2 {strides = array<i32>} : memref<2x4x16x16xf32, #tpu.memory_space<vmem>>, vector<2x4x16x16xf32>,
    %c0_15 = arith.constant 0 : index
    %c0_16 = arith.constant 0 : index
    %c0_17 = arith.constant 0 : index
    %4 = vector.load %arg2[%c0_15, %c0_16, %c0_17] : memref<2x8x8xf32, #tpu.memory_space<vmem>>, vector<2x8x8xf32>
    %c0_18 = arith.constant 0 : index
    %c0_19 = arith.constant 0 : index
    %c0_20 = arith.constant 0 : index
    %5 = vector.load %arg6[%c0_18, %c0_19, %c0_20] : memref<2x8x8xf32, #tpu.memory_space<vmem>>, vector<2x8x8xf32>
    tpu.vector_store %arg6[%c0_18, %c0_19, %c0_20], %4 {strides = array<i32>} : memref<2x8x8xf32, #tpu.memory_space<vmem>>, vector<2x8x8xf32>,
    %c0_21 = arith.constant 0 : index
    %c0_22 = arith.constant 0 : index
    %6 = vector.load %arg3[%c0_21, %c0_22] : memref<2x8xf32, #tpu.memory_space<vmem>>, vector<2x8xf32>
    %c0_23 = arith.constant 0 : index
    %c0_24 = arith.constant 0 : index
    %7 = vector.load %arg7[%c0_23, %c0_24] : memref<2x8xf32, #tpu.memory_space<vmem>>, vector<2x8xf32>
    tpu.vector_store %arg7[%c0_23, %c0_24], %6 {strides = array<i32>} : memref<2x8xf32, #tpu.memory_space<vmem>>, vector<2x8xf32>,
    return
  }
}

</mosaic_0001>

<llo_original>
// kernel: attention_visualization_forward.1
$region0: #{attention_visualization_forward.1}
  #allocation0 [shape = 'u32[]', space=smem, size = 0x4, offset = 0x4, fixed_abs, tag = 'smem constant byte address 0x4 - core index']
  #allocation1 [shape = 'u32[144,128]{1,0:T(1,128)}', space=vmem, size = 0x12000, scoped, tag = 'internal scratch']
  %s0 = inlined_call_operand.vmem [shape: f32[2,4,16,16], index: 0, kind: input, shape index: {}, may-alias: {0,4}]
  %s1 = inlined_call_operand.vmem [shape: f32[2,4,16,16], index: 1, kind: input, shape index: {}, may-alias: {1,5}]
  %s2 = inlined_call_operand.vmem [shape: f32[2,8,8], index: 2, kind: input, shape index: {}, may-alias: {2,6}]
  %s3 = inlined_call_operand.vmem [shape: f32[2,8], index: 3, kind: input, shape index: {}, may-alias: {3,7}]
  %s4 = inlined_call_operand.vmem [shape: f32[2,4,16,16], index: 4, kind: output, shape index: {0}, may-alias: {0,4}]
  %s5 = inlined_call_operand.vmem [shape: f32[2,4,16,16], index: 5, kind: output, shape index: {1}, may-alias: {1,5}]
  %s6 = inlined_call_operand.vmem [shape: f32[2,8,8], index: 6, kind: output, shape index: {2}, may-alias: {2,6}]
  %s7 = inlined_call_operand.vmem [shape: f32[2,8], index: 7, kind: output, shape index: {3}, may-alias: {3,7}]
  %8 = xla_tuple %s4, %s5, %s6, %s7
  %s9 = sld [smem:[#allocation0]]
  $region50: #{attention_visualization_forward.1} parent=0
    _
  %s11 = ssub.s32 1, %s9
  %s12 = scalar_select 0, %s11, %s9
  // Predicated region
  $region2: #{attention_visualization_forward.1} parent=0 // pred_check
    _
  $region3: #{attention_visualization_forward.1} parent=0 // pred_check_branch
    %14 = sbr.rel (0) target = $region5
  $region4: #{attention_visualization_forward.1} parent=0 // pred_region
    _
  $region5: #{attention_visualization_forward.1} parent=0 // pred_fallthru
    _
  // Predicated region
  $region6: #{attention_visualization_forward.1} parent=0 // pred_check
    _
  $region7: #{attention_visualization_forward.1} parent=0 // pred_check_branch
    %16 = sbr.rel (0) target = $region9
  $region8: #{attention_visualization_forward.1} parent=0 // pred_region
    _
  $region9: #{attention_visualization_forward.1} parent=0 // pred_fallthru
    _
  // Predicated region
  $region10: #{attention_visualization_forward.1} parent=0 // pred_check
    _
  $region11: #{attention_visualization_forward.1} parent=0 // pred_check_branch
    %18 = sbr.rel (0) target = $region13
  $region12: #{attention_visualization_forward.1} parent=0 // pred_region
    _
  $region13: #{attention_visualization_forward.1} parent=0 // pred_fallthru
    _
  // Predicated region
  $region14: #{attention_visualization_forward.1} parent=0 // pred_check
    _
  $region15: #{attention_visualization_forward.1} parent=0 // pred_check_branch
    %20 = sbr.rel (0) target = $region17
  $region16: #{attention_visualization_forward.1} parent=0 // pred_region
    _
  $region17: #{attention_visualization_forward.1} parent=0 // pred_fallthru
    _
  %v21 = vld [vmem:[%s0] sm:$0xff]
  %v22 = vld [vmem:[%s0 + $0x8] sm:$0xff]
  %v23 = vld [vmem:[%s0 + $0x10] sm:$0xff]
  %v24 = vld [vmem:[%s0 + $0x18] sm:$0xff]
  %v25 = vld [vmem:[%s0 + $0x20] sm:$0xff]
  %v26 = vld [vmem:[%s0 + $0x28] sm:$0xff]
  %v27 = vld [vmem:[%s0 + $0x30] sm:$0xff]
  %v28 = vld [vmem:[%s0 + $0x38] sm:$0xff]
  %v29 = vld [vmem:[%s0 + $0x40] sm:$0xff]
  %v30 = vld [vmem:[%s0 + $0x48] sm:$0xff]
  %v31 = vld [vmem:[%s0 + $0x50] sm:$0xff]
  %v32 = vld [vmem:[%s0 + $0x58] sm:$0xff]
  %v33 = vld [vmem:[%s0 + $0x60] sm:$0xff]
  %v34 = vld [vmem:[%s0 + $0x68] sm:$0xff]
  %v35 = vld [vmem:[%s0 + $0x70] sm:$0xff]
  %v36 = vld [vmem:[%s0 + $0x78] sm:$0xff]
  %vm37 = vcmask 130048
  %38 = vst.msk [vmem:[%s4] sm:$0xff] %vm37, %v21
  %39 = vst.msk [vmem:[%s4 + $0x8] sm:$0xff] %vm37, %v22
  %40 = vst.msk [vmem:[%s4 + $0x10] sm:$0xff] %vm37, %v23
  %41 = vst.msk [vmem:[%s4 + $0x18] sm:$0xff] %vm37, %v24
  %42 = vst.msk [vmem:[%s4 + $0x20] sm:$0xff] %vm37, %v25
  %43 = vst.msk [vmem:[%s4 + $0x28] sm:$0xff] %vm37, %v26
  %44 = vst.msk [vmem:[%s4 + $0x30] sm:$0xff] %vm37, %v27
  %45 = vst.msk [vmem:[%s4 + $0x38] sm:$0xff] %vm37, %v28
  %46 = vst.msk [vmem:[%s4 + $0x40] sm:$0xff] %vm37, %v29
  %47 = vst.msk [vmem:[%s4 + $0x48] sm:$0xff] %vm37, %v30
  %48 = vst.msk [vmem:[%s4 + $0x50] sm:$0xff] %vm37, %v31
  %49 = vst.msk [vmem:[%s4 + $0x58] sm:$0xff] %vm37, %v32
  %50 = vst.msk [vmem:[%s4 + $0x60] sm:$0xff] %vm37, %v33
  %51 = vst.msk [vmem:[%s4 + $0x68] sm:$0xff] %vm37, %v34
  %52 = vst.msk [vmem:[%s4 + $0x70] sm:$0xff] %vm37, %v35
  %53 = vst.msk [vmem:[%s4 + $0x78] sm:$0xff] %vm37, %v36
  %v54 = vld [vmem:[%s1] sm:$0xff]
  %v55 = vld [vmem:[%s1 + $0x8] sm:$0xff]
  %v56 = vld [vmem:[%s1 + $0x10] sm:$0xff]
  %v57 = vld [vmem:[%s1 + $0x18] sm:$0xff]
  %v58 = vld [vmem:[%s1 + $0x20] sm:$0xff]
  %v59 = vld [vmem:[%s1 + $0x28] sm:$0xff]
  %v60 = vld [vmem:[%s1 + $0x30] sm:$0xff]
  %v61 = vld [vmem:[%s1 + $0x38] sm:$0xff]
  %v62 = vld [vmem:[%s1 + $0x40] sm:$0xff]
  %v63 = vld [vmem:[%s1 + $0x48] sm:$0xff]
  %v64 = vld [vmem:[%s1 + $0x50] sm:$0xff]
  %v65 = vld [vmem:[%s1 + $0x58] sm:$0xff]
  %v66 = vld [vmem:[%s1 + $0x60] sm:$0xff]
  %v67 = vld [vmem:[%s1 + $0x68] sm:$0xff]
  %v68 = vld [vmem:[%s1 + $0x70] sm:$0xff]
  %v69 = vld [vmem:[%s1 + $0x78] sm:$0xff]
  %70 = vst.msk [vmem:[%s5] sm:$0xff] %vm37, %v54
  %71 = vst.msk [vmem:[%s5 + $0x8] sm:$0xff] %vm37, %v55
  %72 = vst.msk [vmem:[%s5 + $0x10] sm:$0xff] %vm37, %v56
  %73 = vst.msk [vmem:[%s5 + $0x18] sm:$0xff] %vm37, %v57
  %74 = vst.msk [vmem:[%s5 + $0x20] sm:$0xff] %vm37, %v58
  %75 = vst.msk [vmem:[%s5 + $0x28] sm:$0xff] %vm37, %v59
  %76 = vst.msk [vmem:[%s5 + $0x30] sm:$0xff] %vm37, %v60
  %77 = vst.msk [vmem:[%s5 + $0x38] sm:$0xff] %vm37, %v61
  %78 = vst.msk [vmem:[%s5 + $0x40] sm:$0xff] %vm37, %v62
  %79 = vst.msk [vmem:[%s5 + $0x48] sm:$0xff] %vm37, %v63
  %80 = vst.msk [vmem:[%s5 + $0x50] sm:$0xff] %vm37, %v64
  %81 = vst.msk [vmem:[%s5 + $0x58] sm:$0xff] %vm37, %v65
  %82 = vst.msk [vmem:[%s5 + $0x60] sm:$0xff] %vm37, %v66
  %83 = vst.msk [vmem:[%s5 + $0x68] sm:$0xff] %vm37, %v67
  %84 = vst.msk [vmem:[%s5 + $0x70] sm:$0xff] %vm37, %v68
  %85 = vst.msk [vmem:[%s5 + $0x78] sm:$0xff] %vm37, %v69
  %v86 = vld [vmem:[%s2] sm:$0xff]
  %v87 = vld [vmem:[%s2 + $0x8] sm:$0xff]
  %vm88 = vcmask 64512
  %89 = vst.msk [vmem:[%s6] sm:$0xff] %vm88, %v86
  %90 = vst.msk [vmem:[%s6 + $0x8] sm:$0xff] %vm88, %v87
  %v91 = vld [vmem:[%s3] sm:$0x3]
  %vm92 = vcmask 58368
  %93 = vst.msk [vmem:[%s7] sm:$0x3] %vm92, %v91
  // Predicated region
  $region18: #{attention_visualization_forward.1} parent=0 // pred_check
    _
  $region19: #{attention_visualization_forward.1} parent=0 // pred_check_branch
    %95 = sbr.rel (0) target = $region21
  $region20: #{attention_visualization_forward.1} parent=0 // pred_region
    _
  $region21: #{attention_visualization_forward.1} parent=0 // pred_fallthru
    _
  // Predicated region
  $region22: #{attention_visualization_forward.1} parent=0 // pred_check
    _
  $region23: #{attention_visualization_forward.1} parent=0 // pred_check_branch
    %97 = sbr.rel (0) target = $region25
  $region24: #{attention_visualization_forward.1} parent=0 // pred_region
    _
  $region25: #{attention_visualization_forward.1} parent=0 // pred_fallthru
    _
  // Predicated region
  $region26: #{attention_visualization_forward.1} parent=0 // pred_check
    _
  $region27: #{attention_visualization_forward.1} parent=0 // pred_check_branch
    %99 = sbr.rel (0) target = $region29
  $region28: #{attention_visualization_forward.1} parent=0 // pred_region
    _
  $region29: #{attention_visualization_forward.1} parent=0 // pred_fallthru
    _
  // Predicated region
  $region30: #{attention_visualization_forward.1} parent=0 // pred_check
    _
  $region31: #{attention_visualization_forward.1} parent=0 // pred_check_branch
    %101 = sbr.rel (0) target = $region33
  $region32: #{attention_visualization_forward.1} parent=0 // pred_region
    _
  $region33: #{attention_visualization_forward.1} parent=0 // pred_fallthru
    _
  // Predicated region
  $region34: #{attention_visualization_forward.1} parent=0 // pred_check
    _
  $region35: #{attention_visualization_forward.1} parent=0 // pred_check_branch
    %103 = sbr.rel (0) target = $region37
  $region36: #{attention_visualization_forward.1} parent=0 // pred_region
    _
  $region37: #{attention_visualization_forward.1} parent=0 // pred_fallthru
    _
  // Predicated region
  $region38: #{attention_visualization_forward.1} parent=0 // pred_check
    _
  $region39: #{attention_visualization_forward.1} parent=0 // pred_check_branch
    %105 = sbr.rel (0) target = $region41
  $region40: #{attention_visualization_forward.1} parent=0 // pred_region
    _
  $region41: #{attention_visualization_forward.1} parent=0 // pred_fallthru
    _
  // Predicated region
  $region42: #{attention_visualization_forward.1} parent=0 // pred_check
    _
  $region43: #{attention_visualization_forward.1} parent=0 // pred_check_branch
    %107 = sbr.rel (0) target = $region45
  $region44: #{attention_visualization_forward.1} parent=0 // pred_region
    _
  $region45: #{attention_visualization_forward.1} parent=0 // pred_fallthru
    _
  // Predicated region
  $region46: #{attention_visualization_forward.1} parent=0 // pred_check
    _
  $region47: #{attention_visualization_forward.1} parent=0 // pred_check_branch
    %109 = sbr.rel (0) target = $region49
  $region48: #{attention_visualization_forward.1} parent=0 // pred_region
    _
  $region49: #{attention_visualization_forward.1} parent=0 // pred_fallthru
    _

</llo_original>
